<compile_context>
chip_gen: v6e
topology: v6e:2x2x1
jax: 0.10.0
libtpu: 0.0.40
codegen_flags: <defaults>
</compile_context>

<pallas_src>
import jax
import jax.numpy as jnp
from jax.experimental import pallas as pl
from jax.experimental.pallas import tpu as pltpu

BN_EPS = 1e-5
POLICY_CHANNELS = 73


def policy_head_kernel(patches_ref, w1_ref, gamma_ref, beta_ref, w2_ref,
                       b2_ref, out_ref):
    # patches_ref: (N, 9*C, P)   im2col patches, P = H*W on the lane axis
    # w1_ref     : (C, 9*C)      conv1 weight, [c_out, (ky, kx, c_in)]
    # gamma_ref  : (C, 1)        BN scale
    # beta_ref   : (C, 1)        BN shift
    # w2_ref     : (73, C)       conv2 (1x1) weight, [c_out, c_in]
    # b2_ref     : (73, 1)       conv2 bias
    # out_ref    : (N, 73, P)
    N = patches_ref.shape[0]
    P = patches_ref.shape[2]

    w1 = w1_ref[...]

    # conv1: one im2col MXU matmul per sample -> (C, P), channels on sublanes.
    # (conv1's bias is mathematically cancelled by the BN batch-mean
    #  subtraction below, so it is not applied -- dead work otherwise.)
    ys = [jnp.dot(w1, patches_ref[n], preferred_element_type=jnp.float32)
          for n in range(N)]

    # BatchNorm2d, train-mode semantics: biased batch statistics over (N,H,W).
    # Two-pass mean/variance (avoids E[x^2]-mu^2 cancellation).
    inv_cnt = 1.0 / (N * P)
    mu = sum(jnp.sum(y, axis=1, keepdims=True) for y in ys) * inv_cnt      # (C,1)
    var = sum(jnp.sum((y - mu) ** 2, axis=1, keepdims=True)
              for y in ys) * inv_cnt                                       # (C,1)
    s = gamma_ref[...] * jax.lax.rsqrt(var + BN_EPS)                       # (C,1)
    t = beta_ref[...] - mu * s                                             # (C,1)

    # Fused BN-apply + ReLU + conv2 (1x1); lane-dense (73, P) stores.
    w2 = w2_ref[...]
    b2 = b2_ref[...]
    for n in range(N):
        hidden = jnp.maximum(ys[n] * s + t, 0.0)                           # (C,P)
        out_ref[n] = jnp.dot(w2, hidden,
                             preferred_element_type=jnp.float32) + b2


def _im2col_nchw(x_nchw):
    """(N, C, H, W) -> (N, 9*C, H*W) 3x3/pad-1 patches.

    Channel index of the result = (ky*3 + kx)*C + ci, matching the conv1
    weight flattening used in `policy_head`.
    """
    N, C, H, W = x_nchw.shape
    xp = jnp.pad(x_nchw, ((0, 0), (0, 0), (1, 1), (1, 1)))
    taps = [xp[:, :, ky:ky + H, kx:kx + W]
            for ky in range(3) for kx in range(3)]
    return jnp.concatenate(taps, axis=1).reshape(N, 9 * C, H * W)


def policy_head(x_nchw, params):
    """x_nchw: (N, C, H, W) float32. Returns (N, 73, H, W) float32."""
    w1, b1, gamma, beta, w2, b2 = params
    del b1  # exactly cancelled by the BN batch-mean subtraction
    N, C, H, W = x_nchw.shape
    P = H * W

    # Wrapper glue: lane-dense im2col patches + weight reshapes (no transposes
    # of activations, no separate padded copy fed to the kernel 9 times).
    patches = _im2col_nchw(x_nchw)                                  # (N, 9C, P)
    w1_m = jnp.transpose(w1, (0, 2, 3, 1)).reshape(C, 9 * C)        # [co,(ky,kx,ci)]
    w2_m = w2.reshape(POLICY_CHANNELS, C)
    gamma_c = gamma.reshape(C, 1).astype(jnp.float32)
    beta_c = beta.reshape(C, 1).astype(jnp.float32)
    b2_c = b2.reshape(POLICY_CHANNELS, 1)

    vmem = pl.BlockSpec(memory_space=pltpu.MemorySpace.VMEM)
    out = pl.pallas_call(
        policy_head_kernel,
        out_shape=jax.ShapeDtypeStruct((N, POLICY_CHANNELS, P), jnp.float32),
        in_specs=[vmem] * 6,
        out_specs=vmem,
    )(patches, w1_m, gamma_c, beta_c, w2_m, b2_c)

    # Free reshape (no transpose): lane axis p = h*W + w is already NCHW order.
    return out.reshape(N, POLICY_CHANNELS, H, W)


def policy_head_ref(x, params):
    """Pure-JAX reference with identical semantics (for validation)."""
    w1, b1, gamma, beta, w2, b2 = params
    dn = ("NCHW", "OIHW", "NCHW")
    y = jax.lax.conv_general_dilated(x, w1, (1, 1), "SAME",
                                     dimension_numbers=dn)
    y = y + b1[None, :, None, None]
    mu = jnp.mean(y, axis=(0, 2, 3), keepdims=True)
    var = jnp.mean((y - mu) ** 2, axis=(0, 2, 3), keepdims=True)
    y = (y - mu) * jax.lax.rsqrt(var + BN_EPS)
    y = y * gamma[None, :, None, None] + beta[None, :, None, None]
    y = jnp.maximum(y, 0.0)
    out = jax.lax.conv_general_dilated(y, w2, (1, 1), "SAME",
                                       dimension_numbers=dn)
    return out + b2[None, :, None, None]


def init_params(key, in_channels):
    """Deterministic synthetic parameters (PyTorch-style shapes)."""
    C = in_channels
    k1, k2, k3, k4, k5, k6 = jax.random.split(key, 6)
    w1 = jax.random.normal(k1, (C, C, 3, 3), jnp.float32) * 0.1     # [co,ci,ky,kx]
    b1 = jax.random.normal(k2, (C,), jnp.float32) * 0.1
    gamma = 1.0 + jax.random.normal(k3, (C,), jnp.float32) * 0.1
    beta = jax.random.normal(k4, (C,), jnp.float32) * 0.1
    w2 = jax.random.normal(k5, (POLICY_CHANNELS, C, 1, 1), jnp.float32) * 0.1
    b2 = jax.random.normal(k6, (POLICY_CHANNELS,), jnp.float32) * 0.1
    return (w1, b1, gamma, beta, w2, b2)


if __name__ == "__main__":
    key = jax.random.PRNGKey(0)
    k_x, k_p = jax.random.split(key)

    N, C, H, W = 2, 4, 16, 16
    x = jax.random.normal(k_x, (N, C, H, W), jnp.float32)
    params = init_params(k_p, C)

    out = jax.jit(policy_head)(x, params)
    out = jax.block_until_ready(out)

    assert out.shape == (N, POLICY_CHANNELS, H, W), out.shape
    assert out.dtype == jnp.float32
    assert bool(jnp.all(jnp.isfinite(out)))

    # Validate against the pure-JAX reference (loose tol covers MXU precision).
    ref = policy_head_ref(x, params)
    max_err = float(jnp.max(jnp.abs(out - ref)))
    assert max_err < 5e-2, f"max abs error vs reference: {max_err}"

    print("KERNEL_OK")
</pallas_src>

<mosaic_0001>
module attributes {stable_mosaic.version = 11 : i64} {
  func.func @policy_head_kernel(%arg0: memref<2x36x256xf32, #tpu.memory_space<vmem>>, %arg1: memref<4x36xf32, #tpu.memory_space<vmem>>, %arg2: memref<4x1xf32, #tpu.memory_space<vmem>>, %arg3: memref<4x1xf32, #tpu.memory_space<vmem>>, %arg4: memref<73x4xf32, #tpu.memory_space<vmem>>, %arg5: memref<73x1xf32, #tpu.memory_space<vmem>>, %arg6: memref<2x73x256xf32, #tpu.memory_space<vmem>>) attributes {dimension_semantics = [], scalar_prefetch = 0 : i64, scratch_operands = 0 : i64, tpu.core_type = #tpu.core_type<tc>} {
    %c0 = arith.constant 0 : index
    %c0_0 = arith.constant 0 : index
    %0 = vector.load %arg1[%c0, %c0_0] : memref<4x36xf32, #tpu.memory_space<vmem>>, vector<4x36xf32>
    %c0_1 = arith.constant 0 : index
    %c0_2 = arith.constant 0 : index
    %c0_3 = arith.constant 0 : index
    %1 = vector.load %arg0[%c0_1, %c0_2, %c0_3] : memref<2x36x256xf32, #tpu.memory_space<vmem>>, vector<1x36x256xf32>
    %2 = vector.shape_cast %1 : vector<1x36x256xf32> to vector<36x256xf32>
    %cst = arith.constant dense<0.000000e+00> : vector<4x256xf32>
    %3 = tpu.matmul %0, %2, %cst {dimension_numbers = #tpu.dot_dimension_numbers<[1], [0], [0], [1], [0, 0, 1, 1], [], []>} : vector<4x36xf32>, vector<36x256xf32>, vector<4x256xf32> -> vector<4x256xf32>
    %c1 = arith.constant 1 : index
    %c0_4 = arith.constant 0 : index
    %c0_5 = arith.constant 0 : index
    %4 = vector.load %arg0[%c1, %c0_4, %c0_5] : memref<2x36x256xf32, #tpu.memory_space<vmem>>, vector<1x36x256xf32>
    %5 = vector.shape_cast %4 : vector<1x36x256xf32> to vector<36x256xf32>
    %cst_6 = arith.constant dense<0.000000e+00> : vector<4x256xf32>
    %6 = tpu.matmul %0, %5, %cst_6 {dimension_numbers = #tpu.dot_dimension_numbers<[1], [0], [0], [1], [0, 0, 1, 1], [], []>} : vector<4x36xf32>, vector<36x256xf32>, vector<4x256xf32> -> vector<4x256xf32>
    %cst_7 = arith.constant dense<0.000000e+00> : vector<4xf32>
    %7 = vector.multi_reduction <add>, %3, %cst_7 [1] : vector<4x256xf32> to vector<4xf32>
    %8 = vector.shape_cast %7 : vector<4xf32> to vector<4x1xf32>
    %cst_8 = arith.constant 0.000000e+00 : f32
    %9 = vector.broadcast %cst_8 : f32 to vector<4x1xf32>
    %10 = arith.addf %9, %8 : vector<4x1xf32>
    %cst_9 = arith.constant dense<0.000000e+00> : vector<4xf32>
    %11 = vector.multi_reduction <add>, %6, %cst_9 [1] : vector<4x256xf32> to vector<4xf32>
    %12 = vector.shape_cast %11 : vector<4xf32> to vector<4x1xf32>
    %13 = arith.addf %10, %12 : vector<4x1xf32>
    %cst_10 = arith.constant 0.001953125 : f32
    %14 = vector.broadcast %cst_10 : f32 to vector<4x1xf32>
    %15 = arith.mulf %13, %14 : vector<4x1xf32>
    %16 = vector.broadcast %15 : vector<4x1xf32> to vector<4x256xf32>
    %17 = arith.subf %3, %16 : vector<4x256xf32>
    %18 = arith.mulf %17, %17 : vector<4x256xf32>
    %cst_11 = arith.constant dense<0.000000e+00> : vector<4xf32>
    %19 = vector.multi_reduction <add>, %18, %cst_11 [1] : vector<4x256xf32> to vector<4xf32>
    %20 = vector.shape_cast %19 : vector<4xf32> to vector<4x1xf32>
    %cst_12 = arith.constant 0.000000e+00 : f32
    %21 = vector.broadcast %cst_12 : f32 to vector<4x1xf32>
    %22 = arith.addf %21, %20 : vector<4x1xf32>
    %23 = vector.broadcast %15 : vector<4x1xf32> to vector<4x256xf32>
    %24 = arith.subf %6, %23 : vector<4x256xf32>
    %25 = arith.mulf %24, %24 : vector<4x256xf32>
    %cst_13 = arith.constant dense<0.000000e+00> : vector<4xf32>
    %26 = vector.multi_reduction <add>, %25, %cst_13 [1] : vector<4x256xf32> to vector<4xf32>
    %27 = vector.shape_cast %26 : vector<4xf32> to vector<4x1xf32>
    %28 = arith.addf %22, %27 : vector<4x1xf32>
    %cst_14 = arith.constant 0.001953125 : f32
    %29 = vector.broadcast %cst_14 : f32 to vector<4x1xf32>
    %30 = arith.mulf %28, %29 : vector<4x1xf32>
    %c0_15 = arith.constant 0 : index
    %c0_16 = arith.constant 0 : index
    %31 = vector.load %arg2[%c0_15, %c0_16] : memref<4x1xf32, #tpu.memory_space<vmem>>, vector<4x1xf32>
    %cst_17 = arith.constant 9.99999974E-6 : f32
    %32 = vector.broadcast %cst_17 : f32 to vector<4x1xf32>
    %33 = arith.addf %30, %32 : vector<4x1xf32>
    %34 = math.rsqrt %33 : vector<4x1xf32>
    %35 = arith.mulf %31, %34 : vector<4x1xf32>
    %c0_18 = arith.constant 0 : index
    %c0_19 = arith.constant 0 : index
    %36 = vector.load %arg3[%c0_18, %c0_19] : memref<4x1xf32, #tpu.memory_space<vmem>>, vector<4x1xf32>
    %37 = arith.mulf %15, %35 : vector<4x1xf32>
    %38 = arith.subf %36, %37 : vector<4x1xf32>
    %c0_20 = arith.constant 0 : index
    %c0_21 = arith.constant 0 : index
    %39 = vector.load %arg4[%c0_20, %c0_21] : memref<73x4xf32, #tpu.memory_space<vmem>>, vector<73x4xf32>
    %c0_22 = arith.constant 0 : index
    %c0_23 = arith.constant 0 : index
    %40 = vector.load %arg5[%c0_22, %c0_23] : memref<73x1xf32, #tpu.memory_space<vmem>>, vector<73x1xf32>
    %41 = vector.broadcast %35 : vector<4x1xf32> to vector<4x256xf32>
    %42 = arith.mulf %3, %41 : vector<4x256xf32>
    %43 = vector.broadcast %38 : vector<4x1xf32> to vector<4x256xf32>
    %44 = arith.addf %42, %43 : vector<4x256xf32>
    %cst_24 = arith.constant 0.000000e+00 : f32
    %45 = vector.broadcast %cst_24 : f32 to vector<4x256xf32>
    %46 = arith.maximumf %44, %45 : vector<4x256xf32>
    %cst_25 = arith.constant dense<0.000000e+00> : vector<73x256xf32>
    %47 = tpu.matmul %39, %46, %cst_25 {dimension_numbers = #tpu.dot_dimension_numbers<[1], [0], [0], [1], [0, 0, 1, 1], [], []>} : vector<73x4xf32>, vector<4x256xf32>, vector<73x256xf32> -> vector<73x256xf32>
    %48 = vector.broadcast %40 : vector<73x1xf32> to vector<73x256xf32>
    %49 = arith.addf %47, %48 : vector<73x256xf32>
    %c0_26 = arith.constant 0 : index
    %c0_27 = arith.constant 0 : index
    %c0_28 = arith.constant 0 : index
    %50 = vector.load %arg6[%c0_26, %c0_27, %c0_28] : memref<2x73x256xf32, #tpu.memory_space<vmem>>, vector<1x73x256xf32>
    %51 = vector.shape_cast %50 : vector<1x73x256xf32> to vector<73x256xf32>
    %52 = vector.shape_cast %49 : vector<73x256xf32> to vector<1x73x256xf32>
    tpu.vector_store %arg6[%c0_26, %c0_27, %c0_28], %52 {strides = array<i32>} : memref<2x73x256xf32, #tpu.memory_space<vmem>>, vector<1x73x256xf32>,
    %53 = vector.broadcast %35 : vector<4x1xf32> to vector<4x256xf32>
    %54 = arith.mulf %6, %53 : vector<4x256xf32>
    %55 = vector.broadcast %38 : vector<4x1xf32> to vector<4x256xf32>
    %56 = arith.addf %54, %55 : vector<4x256xf32>
    %cst_29 = arith.constant 0.000000e+00 : f32
    %57 = vector.broadcast %cst_29 : f32 to vector<4x256xf32>
    %58 = arith.maximumf %56, %57 : vector<4x256xf32>
    %cst_30 = arith.constant dense<0.000000e+00> : vector<73x256xf32>
    %59 = tpu.matmul %39, %58, %cst_30 {dimension_numbers = #tpu.dot_dimension_numbers<[1], [0], [0], [1], [0, 0, 1, 1], [], []>} : vector<73x4xf32>, vector<4x256xf32>, vector<73x256xf32> -> vector<73x256xf32>
    %60 = vector.broadcast %40 : vector<73x1xf32> to vector<73x256xf32>
    %61 = arith.addf %59, %60 : vector<73x256xf32>
    %c1_31 = arith.constant 1 : index
    %c0_32 = arith.constant 0 : index
    %c0_33 = arith.constant 0 : index
    %62 = vector.load %arg6[%c1_31, %c0_32, %c0_33] : memref<2x73x256xf32, #tpu.memory_space<vmem>>, vector<1x73x256xf32>
    %63 = vector.shape_cast %62 : vector<1x73x256xf32> to vector<73x256xf32>
    %64 = vector.shape_cast %61 : vector<73x256xf32> to vector<1x73x256xf32>
    tpu.vector_store %arg6[%c1_31, %c0_32, %c0_33], %64 {strides = array<i32>} : memref<2x73x256xf32, #tpu.memory_space<vmem>>, vector<1x73x256xf32>,
    return
  }
}

</mosaic_0001>

<llo_original>
// kernel: policy_head.1
$region0: #{policy_head.1}
  #allocation0 [shape = 'u32[]', space=smem, size = 0x4, offset = 0x4, fixed_abs, tag = 'smem constant byte address 0x4 - core index']
  #allocation1 [shape = 'u32[144,128]{1,0:T(1,128)}', space=vmem, size = 0x12000, scoped, tag = 'internal scratch']
  %s0 = inlined_call_operand.vmem [shape: f32[2,36,256], index: 0, kind: input, shape index: {}]
  %s1 = inlined_call_operand.vmem [shape: f32[4,36], index: 1, kind: input, shape index: {}]
  %s2 = inlined_call_operand.vmem [shape: f32[4,1], index: 2, kind: input, shape index: {}]
  %s3 = inlined_call_operand.vmem [shape: f32[4,1], index: 3, kind: input, shape index: {}]
  %s4 = inlined_call_operand.vmem [shape: f32[73,4], index: 4, kind: input, shape index: {}]
  %s5 = inlined_call_operand.vmem [shape: f32[73,1], index: 5, kind: input, shape index: {}]
  %s6 = inlined_call_operand.vmem [shape: f32[2,73,256], index: 6, kind: output, shape index: {}]
  %s7 = sld [smem:[#allocation0]]
  $region34: #{policy_head.1} parent=0
    _
  %s9 = ssub.s32 1, %s7
  %s10 = scalar_select 0, %s9, %s7
  // Predicated region
  $region2: #{policy_head.1} parent=0 // pred_check
    _
  $region3: #{policy_head.1} parent=0 // pred_check_branch
    %12 = sbr.rel (0) target = $region5
  $region4: #{policy_head.1} parent=0 // pred_region
    _
  $region5: #{policy_head.1} parent=0 // pred_fallthru
    _
  // Predicated region
  $region6: #{policy_head.1} parent=0 // pred_check
    _
  $region7: #{policy_head.1} parent=0 // pred_check_branch
    %14 = sbr.rel (0) target = $region9
  $region8: #{policy_head.1} parent=0 // pred_region
    _
  $region9: #{policy_head.1} parent=0 // pred_fallthru
    _
  // Predicated region
  $region10: #{policy_head.1} parent=0 // pred_check
    _
  $region11: #{policy_head.1} parent=0 // pred_check_branch
    %16 = sbr.rel (0) target = $region13
  $region12: #{policy_head.1} parent=0 // pred_region
    _
  $region13: #{policy_head.1} parent=0 // pred_fallthru
    _
  // Predicated region
  $region14: #{policy_head.1} parent=0 // pred_check
    _
  $region15: #{policy_head.1} parent=0 // pred_check_branch
    %18 = sbr.rel (0) target = $region17
  $region16: #{policy_head.1} parent=0 // pred_region
    _
  $region17: #{policy_head.1} parent=0 // pred_fallthru
    _
  // Predicated region
  $region18: #{policy_head.1} parent=0 // pred_check
    _
  $region19: #{policy_head.1} parent=0 // pred_check_branch
    %20 = sbr.rel (0) target = $region21
  $region20: #{policy_head.1} parent=0 // pred_region
    _
  $region21: #{policy_head.1} parent=0 // pred_fallthru
    _
  // Predicated region
  $region22: #{policy_head.1} parent=0 // pred_check
    _
  $region23: #{policy_head.1} parent=0 // pred_check_branch
    %22 = sbr.rel (0) target = $region25
  $region24: #{policy_head.1} parent=0 // pred_region
    _
  $region25: #{policy_head.1} parent=0 // pred_fallthru
    _
  %v23 = vld [vmem:[%s1] sm:$0xf]
  %v24 = vld [vmem:[%s0] sm:$0xff]
  %v25 = vld [vmem:[%s0 + $0x8] sm:$0xff]
  %v26 = vld [vmem:[%s0 + $0x10] sm:$0xff]
  %v27 = vld [vmem:[%s0 + $0x18] sm:$0xff]
  %v28 = vld [vmem:[%s0 + $0x20] sm:$0xff]
  %v29 = vld [vmem:[%s0 + $0x28] sm:$0xff]
  %v30 = vld [vmem:[%s0 + $0x30] sm:$0xff]
  %v31 = vld [vmem:[%s0 + $0x38] sm:$0xff]
  %v32 = vld [vmem:[%s0 + $0x40] sm:$0xf]
  %v33 = vld [vmem:[%s0 + $0x48] sm:$0xf]
  %vm34 = vcmask 293888
  %v36 = vsel %vm34, %v23, 0
  %vm38 = vcmask 1043456
  %v40 = vsel %vm38, %v32, 0
  %v43 = vsel %vm38, %v33, 0
  %45 = vmatprep.subr.mxu0 0.0
  %46 = vmatpush1.msra.mxu0 0.0
  %47 = vmatprep.subr.mxu0 0.0
  %48 = vmatpush1.msra.mxu0 0.0
  %49 = vmatprep.subr.mxu0 0.0
  %50 = vmatpush1.msra.mxu0 0.0
  %51 = vmatprep.subr.mxu0 0.0
  %52 = vmatpush1.msra.mxu0 0.0
  %53 = vmatprep.subr.mxu0 0.0
  %54 = vmatpush1.msra.mxu0 0.0
  %55 = vmatprep.subr.mxu0 0.0
  %56 = vmatpush1.msra.mxu0 0.0
  %57 = vmatprep.subr.mxu0 0.0
  %58 = vmatpush1.msra.mxu0 0.0
  %59 = vmatprep.subr.mxu0 0.0
  %60 = vmatpush1.msra.mxu0 0.0
  %61 = vmatprep.subr.mxu0 0.0
  %62 = vmatpush1.msra.mxu0 0.0
  %63 = vmatprep.subr.mxu0 0.0
  %64 = vmatpush1.msra.mxu0 0.0
  %65 = vmatprep.subr.mxu0 0.0
  %66 = vmatpush1.msra.mxu0 0.0
  %67 = vmatprep.subr.mxu0 %v43
  %68 = vmatpush1.msra.mxu0 %v40
  %69 = vmatprep.subr.mxu0 %v31
  %70 = vmatpush1.msra.mxu0 %v30
  %71 = vmatprep.subr.mxu0 %v29
  %72 = vmatpush1.msra.mxu0 %v28
  %73 = vmatprep.subr.mxu0 %v27
  %74 = vmatpush1.msra.mxu0 %v26
  %75 = vmatprep.subr.mxu0 %v25
  %76 = vmatpush1.msra.mxu0 %v24
  %77 = vmatprep.subr.mxu0 0.0
  %78 = vmatpush2.msra.mxu0 0.0
  %79 = vmatprep.subr.mxu0 0.0
  %80 = vmatpush2.msra.mxu0 0.0
  %81 = vmatprep.subr.mxu0 0.0
  %82 = vmatpush2.msra.mxu0 0.0
  %83 = vmatprep.subr.mxu0 0.0
  %84 = vmatpush2.msra.mxu0 0.0
  %85 = vmatprep.subr.mxu0 0.0
  %86 = vmatpush2.msra.mxu0 0.0
  %87 = vmatprep.subr.mxu0 0.0
  %88 = vmatpush2.msra.mxu0 0.0
  %89 = vmatprep.subr.mxu0 0.0
  %90 = vmatpush2.msra.mxu0 0.0
  %91 = vmatprep.subr.mxu0 0.0
  %92 = vmatpush2.msra.mxu0 0.0
  %93 = vmatprep.subr.mxu0 0.0
  %94 = vmatpush2.msra.mxu0 0.0
  %95 = vmatprep.subr.mxu0 0.0
  %96 = vmatpush2.msra.mxu0 0.0
  %97 = vmatprep.subr.mxu0 0.0
  %98 = vmatpush2.msra.mxu0 0.0
  %99 = vmatprep.subr.mxu0 0.0
  %100 = vmatpush2.msra.mxu0 0.0
  %101 = vmatprep.subr.mxu0 0.0
  %102 = vmatpush2.msra.mxu0 0.0
  %103 = vmatprep.subr.mxu0 0.0
  %104 = vmatpush2.msra.mxu0 0.0
  %105 = vmatprep.subr.mxu0 0.0
  %106 = vmatpush2.msra.mxu0 0.0
  %107 = vmatprep.subr.mxu0 0.0
  %108 = vmatpush2.msra.mxu0 0.0
  %109 = vmatprep.mubr.f32.mxu0 0.0
  %110 = vmatmul.mubr.f32.gmra.mxu0 %v36
  %v111 = vpop.f32.mrf.mxu0
  %v112 = vadd.f32 0.0, %v111
  %v113 = vpop.f32.mrf.mxu0
  %v114 = vadd.f32 0.0, %v113
  %115 = vdwg.mxu0
  %s116 = scalar_lea.vmem %s0, 80
  %v117 = vld [vmem:[%s116] sm:$0xff]
  %v118 = vld [vmem:[%s116 + $0x8] sm:$0xff]
  %v119 = vld [vmem:[%s116 + $0x10] sm:$0xff]
  %v120 = vld [vmem:[%s116 + $0x18] sm:$0xff]
  %v121 = vld [vmem:[%s116 + $0x20] sm:$0xff]
  %v122 = vld [vmem:[%s116 + $0x28] sm:$0xff]
  %v123 = vld [vmem:[%s116 + $0x30] sm:$0xff]
  %v124 = vld [vmem:[%s116 + $0x38] sm:$0xff]
  %v125 = vld [vmem:[%s116 + $0x40] sm:$0xf]
  %v126 = vld [vmem:[%s116 + $0x48] sm:$0xf]
  %v128 = vsel %vm38, %v125, 0
  %v131 = vsel %vm38, %v126, 0
  %133 = vmatprep.subr.mxu0 0.0
  %134 = vmatpush1.msra.mxu0 0.0
  %135 = vmatprep.subr.mxu0 0.0
  %136 = vmatpush1.msra.mxu0 0.0
  %137 = vmatprep.subr.mxu0 0.0
  %138 = vmatpush1.msra.mxu0 0.0
  %139 = vmatprep.subr.mxu0 0.0
  %140 = vmatpush1.msra.mxu0 0.0
  %141 = vmatprep.subr.mxu0 0.0
  %142 = vmatpush1.msra.mxu0 0.0
  %143 = vmatprep.subr.mxu0 0.0
  %144 = vmatpush1.msra.mxu0 0.0
  %145 = vmatprep.subr.mxu0 0.0
  %146 = vmatpush1.msra.mxu0 0.0
  %147 = vmatprep.subr.mxu0 0.0
  %148 = vmatpush1.msra.mxu0 0.0
  %149 = vmatprep.subr.mxu0 0.0
  %150 = vmatpush1.msra.mxu0 0.0
  %151 = vmatprep.subr.mxu0 0.0
  %152 = vmatpush1.msra.mxu0 0.0
  %153 = vmatprep.subr.mxu0 0.0
  %154 = vmatpush1.msra.mxu0 0.0
  %155 = vmatprep.subr.mxu0 %v131
  %156 = vmatpush1.msra.mxu0 %v128
  %157 = vmatprep.subr.mxu0 %v124
  %158 = vmatpush1.msra.mxu0 %v123
  %159 = vmatprep.subr.mxu0 %v122
  %160 = vmatpush1.msra.mxu0 %v121
  %161 = vmatprep.subr.mxu0 %v120
  %162 = vmatpush1.msra.mxu0 %v119
  %163 = vmatprep.subr.mxu0 %v118
  %164 = vmatpush1.msra.mxu0 %v117
  %165 = vmatprep.subr.mxu0 0.0
  %166 = vmatpush2.msra.mxu0 0.0
  %167 = vmatprep.subr.mxu0 0.0
  %168 = vmatpush2.msra.mxu0 0.0
  %169 = vmatprep.subr.mxu0 0.0
  %170 = vmatpush2.msra.mxu0 0.0
  %171 = vmatprep.subr.mxu0 0.0
  %172 = vmatpush2.msra.mxu0 0.0
  %173 = vmatprep.subr.mxu0 0.0
  %174 = vmatpush2.msra.mxu0 0.0
  %175 = vmatprep.subr.mxu0 0.0
  %176 = vmatpush2.msra.mxu0 0.0
  %177 = vmatprep.subr.mxu0 0.0
  %178 = vmatpush2.msra.mxu0 0.0
  %179 = vmatprep.subr.mxu0 0.0
  %180 = vmatpush2.msra.mxu0 0.0
  %181 = vmatprep.subr.mxu0 0.0
  %182 = vmatpush2.msra.mxu0 0.0
  %183 = vmatprep.subr.mxu0 0.0
  %184 = vmatpush2.msra.mxu0 0.0
  %185 = vmatprep.subr.mxu0 0.0
  %186 = vmatpush2.msra.mxu0 0.0
  %187 = vmatprep.subr.mxu0 0.0
  %188 = vmatpush2.msra.mxu0 0.0
  %189 = vmatprep.subr.mxu0 0.0
  %190 = vmatpush2.msra.mxu0 0.0
  %191 = vmatprep.subr.mxu0 0.0
  %192 = vmatpush2.msra.mxu0 0.0
  %193 = vmatprep.subr.mxu0 0.0
  %194 = vmatpush2.msra.mxu0 0.0
  %195 = vmatprep.subr.mxu0 0.0
  %196 = vmatpush2.msra.mxu0 0.0
  %197 = vmatprep.mubr.f32.mxu0 0.0
  %198 = vmatmul.mubr.f32.gmra.mxu0 %v36
  %v199 = vpop.f32.mrf.mxu0
  %v200 = vadd.f32 0.0, %v199
  %v201 = vpop.f32.mrf.mxu0
  %v202 = vadd.f32 0.0, %v201
  %203 = vdwg.mxu0
  %v204 = vsel %vm38, %v112, 0.0
  %v205 = vsel %vm38, %v114, 0.0
  %v206 = vadd.f32 %v204, %v205
  %207 = vadd.xlane.f32.xlu0 %v206
  %v208 = vpop.xlane.xlu0 %207
  %v209 = vadd.f32 %v208, 0.0
  %v210 = vsel %vm38, %v200, 0.0
  %v211 = vsel %vm38, %v202, 0.0
  %v212 = vadd.f32 %v210, %v211
  %213 = vadd.xlane.f32.xlu0 %v212
  %v214 = vpop.xlane.xlu0 %213
  %v215 = vadd.f32 %v209, %v214
  %v216 = vmul.f32 %v215, 0.001953125
  %v217 = vsub.f32 %v112, %v216
  %v218 = vsub.f32 %v114, %v216
  %v219 = vmul.f32 %v217, %v217
  %v220 = vmul.f32 %v218, %v218
  %v221 = vsel %vm38, %v219, 0.0
  %v222 = vsel %vm38, %v220, 0.0
  %v223 = vadd.f32 %v221, %v222
  %224 = vadd.xlane.f32.xlu0 %v223
  %v225 = vpop.xlane.xlu0 %224
  %v226 = vadd.f32 %v225, 0.0
  %v227 = vsub.f32 %v200, %v216
  %v228 = vsub.f32 %v202, %v216
  %v229 = vmul.f32 %v227, %v227
  %v230 = vmul.f32 %v228, %v228
  %v231 = vsel %vm38, %v229, 0.0
  %v232 = vsel %vm38, %v230, 0.0
  %v233 = vadd.f32 %v231, %v232
  %234 = vadd.xlane.f32.xlu0 %v233
  %v235 = vpop.xlane.xlu0 %234
  %v236 = vadd.f32 %v226, %v235
  %v237 = vmul.f32 %v236, 0.001953125
  %v238 = vld [vmem:[%s2] sm:$0xf]
  %v239 = vadd.f32 %v237, 1e-05
  %v240 = vrsqrt.pop %v239
  %v241 = vmul.f32 %v238, %v240
  %v242 = vld [vmem:[%s3] sm:$0xf]
  %v243 = vmul.f32 %v216, %v241
  %v244 = vsub.f32 %v242, %v243
  %v245 = vld [vmem:[%s4] sm:$0xff]
  %v246 = vld [vmem:[%s4 + $0x8] sm:$0xff]
  %v247 = vld [vmem:[%s4 + $0x10] sm:$0xff]
  %v248 = vld [vmem:[%s4 + $0x18] sm:$0xff]
  %v249 = vld [vmem:[%s4 + $0x20] sm:$0xff]
  %v250 = vld [vmem:[%s4 + $0x28] sm:$0xff]
  %v251 = vld [vmem:[%s4 + $0x30] sm:$0xff]
  %v252 = vld [vmem:[%s4 + $0x38] sm:$0xff]
  %v253 = vld [vmem:[%s4 + $0x40] sm:$0xff]
  %v254 = vld [vmem:[%s4 + $0x48] sm:$0x1]
  %v255 = vld [vmem:[%s5] sm:$0xff]
  %v256 = vld [vmem:[%s5 + $0x8] sm:$0xff]
  %v257 = vld [vmem:[%s5 + $0x10] sm:$0xff]
  %v258 = vld [vmem:[%s5 + $0x18] sm:$0xff]
  %v259 = vld [vmem:[%s5 + $0x20] sm:$0xff]
  %v260 = vld [vmem:[%s5 + $0x28] sm:$0xff]
  %v261 = vld [vmem:[%s5 + $0x30] sm:$0xff]
  %v262 = vld [vmem:[%s5 + $0x38] sm:$0xff]
  %v263 = vld [vmem:[%s5 + $0x40] sm:$0xff]
  %v264 = vld [vmem:[%s5 + $0x48] sm:$0x1]
  %266 = vset.pattern.permute.xlu0 0
  %267 = vperm.xlu0 %266, %v241
  %v268 = vpop.permute.xlu0 %267
  %v270 = vmul.f32 %v112, %v268
  %v271 = vmul.f32 %v114, %v268
  %273 = vset.pattern.permute.xlu0 0
  %274 = vperm.xlu0 %273, %v244
  %v275 = vpop.permute.xlu0 %274
  %v277 = vadd.f32 %v270, %v275
  %v278 = vadd.f32 %v271, %v275
  %v279 = vmax.f32 %v277, 0.0
  %v280 = vmax.f32 %v278, 0.0
  %282 = vset.pattern.permute.xlu0 0
  %283 = vperm.xlu0 %282, %v255
  %v284 = vpop.permute.xlu0 %283
  %287 = vset.pattern.permute.xlu0 0
  %288 = vperm.xlu0 %287, %v256
  %v289 = vpop.permute.xlu0 %288
  %292 = vset.pattern.permute.xlu0 0
  %293 = vperm.xlu0 %292, %v257
  %v294 = vpop.permute.xlu0 %293
  %297 = vset.pattern.permute.xlu0 0
  %298 = vperm.xlu0 %297, %v258
  %v299 = vpop.permute.xlu0 %298
  %302 = vset.pattern.permute.xlu0 0
  %303 = vperm.xlu0 %302, %v259
  %v304 = vpop.permute.xlu0 %303
  %307 = vset.pattern.permute.xlu0 0
  %308 = vperm.xlu0 %307, %v260
  %v309 = vpop.permute.xlu0 %308
  %312 = vset.pattern.permute.xlu0 0
  %313 = vperm.xlu0 %312, %v261
  %v314 = vpop.permute.xlu0 %313
  %317 = vset.pattern.permute.xlu0 0
  %318 = vperm.xlu0 %317, %v262
  %v319 = vpop.permute.xlu0 %318
  %322 = vset.pattern.permute.xlu0 0
  %323 = vperm.xlu0 %322, %v263
  %v324 = vpop.permute.xlu0 %323
  %327 = vset.pattern.permute.xlu0 0
  %328 = vperm.xlu0 %327, %v264
  %v329 = vpop.permute.xlu0 %328
  %vm331 = vcmask 31744
  %v333 = vsel %vm331, %v245, 0
  %v336 = vsel %vm331, %v246, 0
  %v339 = vsel %vm331, %v247, 0
  %v342 = vsel %vm331, %v248, 0
  %v345 = vsel %vm331, %v249, 0
  %v348 = vsel %vm331, %v250, 0
  %v351 = vsel %vm331, %v251, 0
  %v354 = vsel %vm331, %v252, 0
  %v357 = vsel %vm331, %v253, 0
  %v360 = vsel %vm331, %v254, 0
  %v363 = vsel %vm38, %v279, 0
  %v366 = vsel %vm38, %v280, 0
  %368 = vmatprep.subr.mxu0 0.0
  %369 = vmatpush1.msra.mxu0 0.0
  %370 = vmatprep.subr.mxu0 0.0
  %371 = vmatpush1.msra.mxu0 0.0
  %372 = vmatprep.subr.mxu0 0.0
  %373 = vmatpush1.msra.mxu0 0.0
  %374 = vmatprep.subr.mxu0 0.0
  %375 = vmatpush1.msra.mxu0 0.0
  %376 = vmatprep.subr.mxu0 0.0
  %377 = vmatpush1.msra.mxu0 0.0
  %378 = vmatprep.subr.mxu0 0.0
  %379 = vmatpush1.msra.mxu0 0.0
  %380 = vmatprep.subr.mxu0 0.0
  %381 = vmatpush1.msra.mxu0 0.0
  %382 = vmatprep.subr.mxu0 0.0
  %383 = vmatpush1.msra.mxu0 0.0
  %384 = vmatprep.subr.mxu0 0.0
  %385 = vmatpush1.msra.mxu0 0.0
  %386 = vmatprep.subr.mxu0 0.0
  %387 = vmatpush1.msra.mxu0 0.0
  %388 = vmatprep.subr.mxu0 0.0
  %389 = vmatpush1.msra.mxu0 0.0
  %390 = vmatprep.subr.mxu0 0.0
  %391 = vmatpush1.msra.mxu0 0.0
  %392 = vmatprep.subr.mxu0 0.0
  %393 = vmatpush1.msra.mxu0 0.0
  %394 = vmatprep.subr.mxu0 0.0
  %395 = vmatpush1.msra.mxu0 0.0
  %396 = vmatprep.subr.mxu0 0.0
  %397 = vmatpush1.msra.mxu0 0.0
  %398 = vmatprep.subr.mxu0 %v366
  %399 = vmatpush1.msra.mxu0 %v363
  %400 = vmatprep.subr.mxu0 0.0
  %401 = vmatpush2.msra.mxu0 0.0
  %402 = vmatprep.subr.mxu0 0.0
  %403 = vmatpush2.msra.mxu0 0.0
  %404 = vmatprep.subr.mxu0 0.0
  %405 = vmatpush2.msra.mxu0 0.0
  %406 = vmatprep.subr.mxu0 0.0
  %407 = vmatpush2.msra.mxu0 0.0
  %408 = vmatprep.subr.mxu0 0.0
  %409 = vmatpush2.msra.mxu0 0.0
  %410 = vmatprep.subr.mxu0 0.0
  %411 = vmatpush2.msra.mxu0 0.0
  %412 = vmatprep.subr.mxu0 0.0
  %413 = vmatpush2.msra.mxu0 0.0
  %414 = vmatprep.subr.mxu0 0.0
  %415 = vmatpush2.msra.mxu0 0.0
  %416 = vmatprep.subr.mxu0 0.0
  %417 = vmatpush2.msra.mxu0 0.0
  %418 = vmatprep.subr.mxu0 0.0
  %419 = vmatpush2.msra.mxu0 0.0
  %420 = vmatprep.subr.mxu0 0.0
  %421 = vmatpush2.msra.mxu0 0.0
  %422 = vmatprep.subr.mxu0 0.0
  %423 = vmatpush2.msra.mxu0 0.0
  %424 = vmatprep.subr.mxu0 0.0
  %425 = vmatpush2.msra.mxu0 0.0
  %426 = vmatprep.subr.mxu0 0.0
  %427 = vmatpush2.msra.mxu0 0.0
  %428 = vmatprep.subr.mxu0 0.0
  %429 = vmatpush2.msra.mxu0 0.0
  %430 = vmatprep.subr.mxu0 0.0
  %431 = vmatpush2.msra.mxu0 0.0
  %432 = vmatprep.mubr.f32.mxu0 0.0
  %433 = vmatmul.mubr.f32.gmra.mxu0 %v333
  %v434 = vpop.f32.mrf.mxu0
  %v435 = vadd.f32 %v284, %v434
  %v436 = vpop.f32.mrf.mxu0
  %v437 = vadd.f32 %v284, %v436
  %438 = vmatprep.mubr.f32.mxu0 0.0
  %439 = vmatmul.mubr.f32.gmra.mxu0 %v336
  %v440 = vpop.f32.mrf.mxu0
  %v441 = vadd.f32 %v289, %v440
  %v442 = vpop.f32.mrf.mxu0
  %v443 = vadd.f32 %v289, %v442
  %444 = vmatprep.mubr.f32.mxu0 0.0
  %445 = vmatmul.mubr.f32.gmra.mxu0 %v339
  %v446 = vpop.f32.mrf.mxu0
  %v447 = vadd.f32 %v294, %v446
  %v448 = vpop.f32.mrf.mxu0
  %v449 = vadd.f32 %v294, %v448
  %450 = vmatprep.mubr.f32.mxu0 0.0
  %451 = vmatmul.mubr.f32.gmra.mxu0 %v342
  %v452 = vpop.f32.mrf.mxu0
  %v453 = vadd.f32 %v299, %v452
  %v454 = vpop.f32.mrf.mxu0
  %v455 = vadd.f32 %v299, %v454
  %456 = vmatprep.mubr.f32.mxu0 0.0
  %457 = vmatmul.mubr.f32.gmra.mxu0 %v345
  %v458 = vpop.f32.mrf.mxu0
  %v459 = vadd.f32 %v304, %v458
  %v460 = vpop.f32.mrf.mxu0
  %v461 = vadd.f32 %v304, %v460
  %462 = vmatprep.mubr.f32.mxu0 0.0
  %463 = vmatmul.mubr.f32.gmra.mxu0 %v348
  %v464 = vpop.f32.mrf.mxu0
  %v465 = vadd.f32 %v309, %v464
  %v466 = vpop.f32.mrf.mxu0
  %v467 = vadd.f32 %v309, %v466
  %468 = vmatprep.mubr.f32.mxu0 0.0
  %469 = vmatmul.mubr.f32.gmra.mxu0 %v351
  %v470 = vpop.f32.mrf.mxu0
  %v471 = vadd.f32 %v314, %v470
  %v472 = vpop.f32.mrf.mxu0
  %v473 = vadd.f32 %v314, %v472
  %474 = vmatprep.mubr.f32.mxu0 0.0
  %475 = vmatmul.mubr.f32.gmra.mxu0 %v354
  %v476 = vpop.f32.mrf.mxu0
  %v477 = vadd.f32 %v319, %v476
  %v478 = vpop.f32.mrf.mxu0
  %v479 = vadd.f32 %v319, %v478
  %480 = vmatprep.mubr.f32.mxu0 0.0
  %481 = vmatmul.mubr.f32.gmra.mxu0 %v357
  %v482 = vpop.f32.mrf.mxu0
  %v483 = vadd.f32 %v324, %v482
  %v484 = vpop.f32.mrf.mxu0
  %v485 = vadd.f32 %v324, %v484
  %486 = vmatprep.mubr.f32.mxu0 0.0
  %487 = vmatmul.mubr.f32.gmra.mxu0 %v360
  %v488 = vpop.f32.mrf.mxu0
  %v489 = vadd.f32 %v329, %v488
  %v490 = vpop.f32.mrf.mxu0
  %v491 = vadd.f32 %v329, %v490
  %492 = vdwg.mxu0
  %493 = vst [vmem:[%s6] sm:$0xff] %v435
  %494 = vst [vmem:[%s6 + $0x8] sm:$0xff] %v437
  %495 = vst [vmem:[%s6 + $0x10] sm:$0xff] %v441
  %496 = vst [vmem:[%s6 + $0x18] sm:$0xff] %v443
  %497 = vst [vmem:[%s6 + $0x20] sm:$0xff] %v447
  %498 = vst [vmem:[%s6 + $0x28] sm:$0xff] %v449
  %499 = vst [vmem:[%s6 + $0x30] sm:$0xff] %v453
  %500 = vst [vmem:[%s6 + $0x38] sm:$0xff] %v455
  %501 = vst [vmem:[%s6 + $0x40] sm:$0xff] %v459
  %502 = vst [vmem:[%s6 + $0x48] sm:$0xff] %v461
  %503 = vst [vmem:[%s6 + $0x50] sm:$0xff] %v465
  %504 = vst [vmem:[%s6 + $0x58] sm:$0xff] %v467
  %505 = vst [vmem:[%s6 + $0x60] sm:$0xff] %v471
  %506 = vst [vmem:[%s6 + $0x68] sm:$0xff] %v473
  %507 = vst [vmem:[%s6 + $0x70] sm:$0xff] %v477
  %508 = vst [vmem:[%s6 + $0x78] sm:$0xff] %v479
  %509 = vst [vmem:[%s6 + $0x80] sm:$0xff] %v483
  %510 = vst [vmem:[%s6 + $0x88] sm:$0xff] %v485
  %511 = vst [vmem:[%s6 + $0x90] sm:$0x1] %v489
  %512 = vst [vmem:[%s6 + $0x98] sm:$0x1] %v491
  %v513 = vmul.f32 %v200, %v268
  %v514 = vmul.f32 %v202, %v268
  %v515 = vadd.f32 %v513, %v275
  %v516 = vadd.f32 %v514, %v275
  %v517 = vmax.f32 %v515, 0.0
  %v518 = vmax.f32 %v516, 0.0
  %v520 = vsel %vm38, %v517, 0
  %v523 = vsel %vm38, %v518, 0
  %525 = vmatprep.subr.mxu0 0.0
  %526 = vmatpush1.msra.mxu0 0.0
  %527 = vmatprep.subr.mxu0 0.0
  %528 = vmatpush1.msra.mxu0 0.0
  %529 = vmatprep.subr.mxu0 0.0
  %530 = vmatpush1.msra.mxu0 0.0
  %531 = vmatprep.subr.mxu0 0.0
  %532 = vmatpush1.msra.mxu0 0.0
  %533 = vmatprep.subr.mxu0 0.0
  %534 = vmatpush1.msra.mxu0 0.0
  %535 = vmatprep.subr.mxu0 0.0
  %536 = vmatpush1.msra.mxu0 0.0
  %537 = vmatprep.subr.mxu0 0.0
  %538 = vmatpush1.msra.mxu0 0.0
  %539 = vmatprep.subr.mxu0 0.0
  %540 = vmatpush1.msra.mxu0 0.0
  %541 = vmatprep.subr.mxu0 0.0
  %542 = vmatpush1.msra.mxu0 0.0
  %543 = vmatprep.subr.mxu0 0.0
  %544 = vmatpush1.msra.mxu0 0.0
  %545 = vmatprep.subr.mxu0 0.0
  %546 = vmatpush1.msra.mxu0 0.0
  %547 = vmatprep.subr.mxu0 0.0
  %548 = vmatpush1.msra.mxu0 0.0
  %549 = vmatprep.subr.mxu0 0.0
  %550 = vmatpush1.msra.mxu0 0.0
  %551 = vmatprep.subr.mxu0 0.0
  %552 = vmatpush1.msra.mxu0 0.0
  %553 = vmatprep.subr.mxu0 0.0
  %554 = vmatpush1.msra.mxu0 0.0
  %555 = vmatprep.subr.mxu0 %v523
  %556 = vmatpush1.msra.mxu0 %v520
  %557 = vmatprep.subr.mxu0 0.0
  %558 = vmatpush2.msra.mxu0 0.0
  %559 = vmatprep.subr.mxu0 0.0
  %560 = vmatpush2.msra.mxu0 0.0
  %561 = vmatprep.subr.mxu0 0.0
  %562 = vmatpush2.msra.mxu0 0.0
  %563 = vmatprep.subr.mxu0 0.0
  %564 = vmatpush2.msra.mxu0 0.0
  %565 = vmatprep.subr.mxu0 0.0
  %566 = vmatpush2.msra.mxu0 0.0
  %567 = vmatprep.subr.mxu0 0.0
  %568 = vmatpush2.msra.mxu0 0.0
  %569 = vmatprep.subr.mxu0 0.0
  %570 = vmatpush2.msra.mxu0 0.0
  %571 = vmatprep.subr.mxu0 0.0
  %572 = vmatpush2.msra.mxu0 0.0
  %573 = vmatprep.subr.mxu0 0.0
  %574 = vmatpush2.msra.mxu0 0.0
  %575 = vmatprep.subr.mxu0 0.0
  %576 = vmatpush2.msra.mxu0 0.0
  %577 = vmatprep.subr.mxu0 0.0
  %578 = vmatpush2.msra.mxu0 0.0
  %579 = vmatprep.subr.mxu0 0.0
  %580 = vmatpush2.msra.mxu0 0.0
  %581 = vmatprep.subr.mxu0 0.0
  %582 = vmatpush2.msra.mxu0 0.0
  %583 = vmatprep.subr.mxu0 0.0
  %584 = vmatpush2.msra.mxu0 0.0
  %585 = vmatprep.subr.mxu0 0.0
  %586 = vmatpush2.msra.mxu0 0.0
  %587 = vmatprep.subr.mxu0 0.0
  %588 = vmatpush2.msra.mxu0 0.0
  %589 = vmatprep.mubr.f32.mxu0 0.0
  %590 = vmatmul.mubr.f32.gmra.mxu0 %v333
  %v591 = vpop.f32.mrf.mxu0
  %v592 = vadd.f32 %v284, %v591
  %v593 = vpop.f32.mrf.mxu0
  %v594 = vadd.f32 %v284, %v593
  %595 = vmatprep.mubr.f32.mxu0 0.0
  %596 = vmatmul.mubr.f32.gmra.mxu0 %v336
  %v597 = vpop.f32.mrf.mxu0
  %v598 = vadd.f32 %v289, %v597
  %v599 = vpop.f32.mrf.mxu0
  %v600 = vadd.f32 %v289, %v599
  %601 = vmatprep.mubr.f32.mxu0 0.0
  %602 = vmatmul.mubr.f32.gmra.mxu0 %v339
  %v603 = vpop.f32.mrf.mxu0
  %v604 = vadd.f32 %v294, %v603
  %v605 = vpop.f32.mrf.mxu0
  %v606 = vadd.f32 %v294, %v605
  %607 = vmatprep.mubr.f32.mxu0 0.0
  %608 = vmatmul.mubr.f32.gmra.mxu0 %v342
  %v609 = vpop.f32.mrf.mxu0
  %v610 = vadd.f32 %v299, %v609
  %v611 = vpop.f32.mrf.mxu0
  %v612 = vadd.f32 %v299, %v611
  %613 = vmatprep.mubr.f32.mxu0 0.0
  %614 = vmatmul.mubr.f32.gmra.mxu0 %v345
  %v615 = vpop.f32.mrf.mxu0
  %v616 = vadd.f32 %v304, %v615
  %v617 = vpop.f32.mrf.mxu0
  %v618 = vadd.f32 %v304, %v617
  %619 = vmatprep.mubr.f32.mxu0 0.0
  %620 = vmatmul.mubr.f32.gmra.mxu0 %v348
  %v621 = vpop.f32.mrf.mxu0
  %v622 = vadd.f32 %v309, %v621
  %v623 = vpop.f32.mrf.mxu0
  %v624 = vadd.f32 %v309, %v623
  %625 = vmatprep.mubr.f32.mxu0 0.0
  %626 = vmatmul.mubr.f32.gmra.mxu0 %v351
  %v627 = vpop.f32.mrf.mxu0
  %v628 = vadd.f32 %v314, %v627
  %v629 = vpop.f32.mrf.mxu0
  %v630 = vadd.f32 %v314, %v629
  %631 = vmatprep.mubr.f32.mxu0 0.0
  %632 = vmatmul.mubr.f32.gmra.mxu0 %v354
  %v633 = vpop.f32.mrf.mxu0
  %v634 = vadd.f32 %v319, %v633
  %v635 = vpop.f32.mrf.mxu0
  %v636 = vadd.f32 %v319, %v635
  %637 = vmatprep.mubr.f32.mxu0 0.0
  %638 = vmatmul.mubr.f32.gmra.mxu0 %v357
  %v639 = vpop.f32.mrf.mxu0
  %v640 = vadd.f32 %v324, %v639
  %v641 = vpop.f32.mrf.mxu0
  %v642 = vadd.f32 %v324, %v641
  %643 = vmatprep.mubr.f32.mxu0 0.0
  %644 = vmatmul.mubr.f32.gmra.mxu0 %v360
  %v645 = vpop.f32.mrf.mxu0
  %v646 = vadd.f32 %v329, %v645
  %v647 = vpop.f32.mrf.mxu0
  %v648 = vadd.f32 %v329, %v647
  %649 = vdwg.mxu0
  %s650 = scalar_lea.vmem %s6, 160
  %651 = vst [vmem:[%s650] sm:$0xff] %v592
  %652 = vst [vmem:[%s650 + $0x8] sm:$0xff] %v594
  %653 = vst [vmem:[%s650 + $0x10] sm:$0xff] %v598
  %654 = vst [vmem:[%s650 + $0x18] sm:$0xff] %v600
  %655 = vst [vmem:[%s650 + $0x20] sm:$0xff] %v604
  %656 = vst [vmem:[%s650 + $0x28] sm:$0xff] %v606
  %657 = vst [vmem:[%s650 + $0x30] sm:$0xff] %v610
  %658 = vst [vmem:[%s650 + $0x38] sm:$0xff] %v612
  %659 = vst [vmem:[%s650 + $0x40] sm:$0xff] %v616
  %660 = vst [vmem:[%s650 + $0x48] sm:$0xff] %v618
  %661 = vst [vmem:[%s650 + $0x50] sm:$0xff] %v622
  %662 = vst [vmem:[%s650 + $0x58] sm:$0xff] %v624
  %663 = vst [vmem:[%s650 + $0x60] sm:$0xff] %v628
  %664 = vst [vmem:[%s650 + $0x68] sm:$0xff] %v630
  %665 = vst [vmem:[%s650 + $0x70] sm:$0xff] %v634
  %666 = vst [vmem:[%s650 + $0x78] sm:$0xff] %v636
  %667 = vst [vmem:[%s650 + $0x80] sm:$0xff] %v640
  %668 = vst [vmem:[%s650 + $0x88] sm:$0xff] %v642
  %669 = vst [vmem:[%s650 + $0x90] sm:$0x1] %v646
  %670 = vst [vmem:[%s650 + $0x98] sm:$0x1] %v648
  // Predicated region
  $region26: #{policy_head.1} parent=0 // pred_check
    _
  $region27: #{policy_head.1} parent=0 // pred_check_branch
    %672 = sbr.rel (0) target = $region29
  $region28: #{policy_head.1} parent=0 // pred_region
    _
  $region29: #{policy_head.1} parent=0 // pred_fallthru
    _
  // Predicated region
  $region30: #{policy_head.1} parent=0 // pred_check
    _
  $region31: #{policy_head.1} parent=0 // pred_check_branch
    %674 = sbr.rel (0) target = $region33
  $region32: #{policy_head.1} parent=0 // pred_region
    _
  $region33: #{policy_head.1} parent=0 // pred_fallthru
    _

</llo_original>
